<compile_context>
chip_gen: v6e
topology: v6e:2x2x1
jax: 0.10.0
libtpu: 0.0.40
codegen_flags: <defaults>
</compile_context>

<pallas_src>
import functools

import jax
import jax.numpy as jnp
import numpy as np
from jax import lax
from jax.experimental import pallas as pl
from jax.experimental.pallas import tpu as pltpu


def _ect_points_kernel(v_aug_ref, x_ref, batch_ref, out_ref, *, g_pad):
    """One (bt_block, node_tile) grid point; accumulates into resident [G_pad, bt_block] output."""
    n_idx = pl.program_id(1)  # node-tile (reduction) axis

    @pl.when(n_idx == 0)
    def _init():
        out_ref[...] = jnp.zeros_like(out_ref)

    # One MXU matmul gives the pre-activation directly:
    #   s[n, b*T+t] = 100 * (lin[b] - (x @ v)[n, t])
    s = jnp.dot(x_ref[...], v_aug_ref[...], preferred_element_type=jnp.float32)

    # sigmoid(200*z) == 0.5*tanh(100*z) + 0.5  (single EUP op + one VPU fma),
    # narrowed to bf16 for the segment-sum matmul's weight stream.
    ecc = (jnp.tanh(s) * 0.5 + 0.5).astype(jnp.bfloat16)

    # In-kernel one-hot graph assignment (built directly in bf16):
    #   onehot[g, n] = (batch[n] == g).  Padded nodes carry id == g_pad
    #   -> all-zero column -> dropped (matches torch_scatter dim_size semantics).
    tile_n = x_ref.shape[0]
    gids = lax.broadcasted_iota(jnp.int32, (g_pad, tile_n), 0)
    onehot = (gids == batch_ref[...]).astype(jnp.bfloat16)          # [G_pad, tile_n]

    # Segment-sum over nodes as one lane-dense MXU matmul, f32 accumulation in VMEM.
    out_ref[...] += jnp.dot(onehot, ecc, preferred_element_type=jnp.float32)


def _vmem_limit_bytes():
    """Generation-aware VMEM cap: ~3/4 of capacity, <= 96 MiB (v7x has 64 MiB/TC)."""
    try:
        cap = pltpu.get_tpu_info().vmem_capacity_bytes
    except Exception:
        cap = 64 * 1024 * 1024
    return int(min(96 * 1024 * 1024, (cap * 3) // 4))


def ect_points_pallas(x, v, lin, batch, num_graphs, *, max_tile_n=2048, sharpness=200.0):
    N, F = x.shape
    T = v.shape[1]
    B = lin.shape[0]
    BT = B * T

    # Pad graph count to a sublane multiple (extra rows are zero and sliced off).
    g_pad = max(8, ((num_graphs + 7) // 8) * 8)

    # Node tiling: single full tile for small N, 128-aligned tiles otherwise.
    if N <= max_tile_n:
        tile = ((N + 7) // 8) * 8
        n_pad = tile
    else:
        tile = max_tile_n                      # multiple of 128
        n_pad = ((N + tile - 1) // tile) * tile
    n_tiles = n_pad // tile

    # Lane (B*T) split so both v7x TensorCores get an independent column block.
    bt_blocks = 2 if (BT % 256 == 0) else 1
    bt_block = BT // bt_blocks

    # Pad nodes; padded rows get an out-of-range graph id so they contribute nothing.
    x_p = jnp.zeros((n_pad, F), jnp.float32).at[:N].set(x.astype(jnp.float32))
    batch_p = jnp.full((1, n_pad), g_pad, jnp.int32).at[0, :N].set(batch.astype(jnp.int32))

    # Affine fold (loop-invariant layout plumbing in the XLA wrapper):
    #   x_aug = [x | 1]                                  [n_pad, F+1]
    #   v_aug = [[-0.5*s * v_rep], [0.5*s * lin_bt]]     [F+1,  B*T]
    # so  x_aug @ v_aug = 0.5*s*(lin - x@v)  and  sigmoid(s*z) = 0.5*tanh(0.5*s*z)+0.5.
    half = 0.5 * sharpness
    v_rep = jnp.tile(v.astype(jnp.float32), (1, B))               # [F,  B*T]
    lin_bt = jnp.repeat(lin.astype(jnp.float32), T)[None, :]      # [1,  B*T]
    v_aug = jnp.concatenate([-half * v_rep, half * lin_bt], axis=0)         # [F+1, B*T]
    x_aug = jnp.concatenate([x_p, jnp.ones((n_pad, 1), jnp.float32)], axis=1)  # [n_pad, F+1]

    out_flat = pl.pallas_call(
        functools.partial(_ect_points_kernel, g_pad=g_pad),
        out_shape=jax.ShapeDtypeStruct((g_pad, BT), jnp.float32),
        grid=(bt_blocks, n_tiles),                       # reduction (nodes) axis last
        in_specs=[
            pl.BlockSpec((F + 1, bt_block), lambda i, n: (0, i)),   # v_aug column block
            pl.BlockSpec((tile, F + 1), lambda i, n: (n, 0)),       # x_aug node tile
            pl.BlockSpec((1, tile), lambda i, n: (0, n)),           # batch-id tile (int32)
        ],
        # Output resident across the node-tile reduction axis (accumulator pattern),
        # blocked along B*T for the parallel axis.
        out_specs=pl.BlockSpec((g_pad, bt_block), lambda i, n: (0, i)),
        compiler_params=pltpu.CompilerParams(
            dimension_semantics=("parallel", "arbitrary"),
            vmem_limit_bytes=_vmem_limit_bytes(),
        ),
    )(v_aug, x_aug, batch_p)

    # [G_pad, B*T] -> [B, G, T]   (lane-dense slab -> module's output layout)
    return out_flat[:num_graphs].reshape(num_graphs, B, T).transpose(1, 0, 2)


if __name__ == "__main__":
    key = jax.random.PRNGKey(0)
    kx, kv = jax.random.split(key)

    # EctConfig-equivalent (small): num_features=3, num_thetas=16, bump_steps=32, R=1.1
    F, T, B, R = 3, 16, 32, 1.1
    N, G = 16, 2

    # Deterministic parameter init mirroring EctLayer.__init__ (fixed=False):
    #   v = (rand(F, T) - 0.5).T ; row-normalize ; transpose back -> unit-norm columns.
    v_raw = (jax.random.uniform(kv, (F, T), dtype=jnp.float32) - 0.5).T      # [T, F]
    v_raw = v_raw / jnp.sqrt(jnp.sum(v_raw ** 2, axis=1, keepdims=True))
    v = v_raw.T                                                               # [F, T]
    lin = jnp.linspace(-R, R, B, dtype=jnp.float32)                           # [B]

    # Example "data": node features + batch vector (two graphs, 8 nodes each).
    x = jax.random.normal(kx, (N, F), dtype=jnp.float32)
    batch = jnp.concatenate(
        [jnp.zeros(N // 2, dtype=jnp.int32), jnp.ones(N - N // 2, dtype=jnp.int32)]
    )

    out = jax.block_until_ready(ect_points_pallas(x, v, lin, batch, G))

    # Pure-JAX f32 reference of compute_ect_points / compute_ecc semantics.
    nh = x @ v                                                     # [N, T]
    ecc = jax.nn.sigmoid(200.0 * (lin[:, None, None] - nh[None]))  # [B, N, T]
    onehot = (batch[None, :] == jnp.arange(G)[:, None]).astype(jnp.float32)
    ref = jnp.einsum("gn,bnt->bgt", onehot, ecc)                   # [B, G, T]

    assert out.shape == (B, G, T) and out.dtype == jnp.float32
    # Tolerance accounts for the bf16 ecc/one-hot segment-sum (f32 accumulation);
    # per-element ecc error <= ~4e-3, summed over <= 8 nodes per graph here.
    np.testing.assert_allclose(np.asarray(out), np.asarray(ref), rtol=2e-2, atol=5e-2)
    print("KERNEL_OK")
</pallas_src>

<mosaic_0001>
module attributes {stable_mosaic.version = 11 : i64} {
  func.func @_ect_points_kernel(%arg0: i32, %arg1: i32, %arg2: memref<4x256xf32, #tpu.memory_space<vmem>>, %arg3: memref<16x4xf32, #tpu.memory_space<vmem>>, %arg4: memref<1x16xi32, #tpu.memory_space<vmem>>, %arg5: memref<8x256xf32, #tpu.memory_space<vmem>>) attributes {dimension_semantics = [#tpu.dimension_semantics<parallel>, #tpu.dimension_semantics<arbitrary>], iteration_bounds = array<i64: 2, 1>, scalar_prefetch = 0 : i64, scratch_operands = 0 : i64, tpu.core_type = #tpu.core_type<tc>, window_params = [{transform_indices = @transform_0, window_bounds = array<i64: 4, 256>}, {transform_indices = @transform_1, window_bounds = array<i64: 16, 4>}, {transform_indices = @transform_2, window_bounds = array<i64: 1, 16>}, {transform_indices = @transform_3, window_bounds = array<i64: 8, 256>}]} {
    %c0_i32 = arith.constant 0 : i32
    %0 = arith.cmpi eq, %arg1, %c0_i32 : i32
    %1 = arith.extui %0 : i1 to i32
    %c0_i32_0 = arith.constant 0 : i32
    %2 = arith.cmpi ne, %1, %c0_i32_0 : i32
    scf.if %2 {
      %cst_13 = arith.constant 0.000000e+00 : f32
      %23 = vector.broadcast %cst_13 : f32 to vector<8x256xf32>
      %c0_14 = arith.constant 0 : index
      %c0_15 = arith.constant 0 : index
      %24 = vector.load %arg5[%c0_14, %c0_15] : memref<8x256xf32, #tpu.memory_space<vmem>>, vector<8x256xf32>
      tpu.vector_store %arg5[%c0_14, %c0_15], %23 {strides = array<i32>} : memref<8x256xf32, #tpu.memory_space<vmem>>, vector<8x256xf32>,
    } else {
    }
    %c0 = arith.constant 0 : index
    %c0_1 = arith.constant 0 : index
    %3 = vector.load %arg3[%c0, %c0_1] : memref<16x4xf32, #tpu.memory_space<vmem>>, vector<16x4xf32>
    %c0_2 = arith.constant 0 : index
    %c0_3 = arith.constant 0 : index
    %4 = vector.load %arg2[%c0_2, %c0_3] : memref<4x256xf32, #tpu.memory_space<vmem>>, vector<4x256xf32>
    %cst = arith.constant dense<0.000000e+00> : vector<16x256xf32>
    %5 = tpu.matmul %3, %4, %cst {dimension_numbers = #tpu.dot_dimension_numbers<[1], [0], [0], [1], [0, 0, 1, 1], [], []>} : vector<16x4xf32>, vector<4x256xf32>, vector<16x256xf32> -> vector<16x256xf32>
    %6 = math.tanh %5 : vector<16x256xf32>
    %cst_4 = arith.constant 5.000000e-01 : f32
    %7 = vector.broadcast %cst_4 : f32 to vector<16x256xf32>
    %8 = arith.mulf %6, %7 : vector<16x256xf32>
    %cst_5 = arith.constant 5.000000e-01 : f32
    %9 = vector.broadcast %cst_5 : f32 to vector<16x256xf32>
    %10 = arith.addf %8, %9 : vector<16x256xf32>
    %11 = arith.truncf %10 : vector<16x256xf32> to vector<16x256xbf16>
    %12 = tpu.iota {dimensions = array<i32: 0>} : vector<8x16xi32>
    %c0_6 = arith.constant 0 : index
    %c0_7 = arith.constant 0 : index
    %13 = vector.load %arg4[%c0_6, %c0_7] : memref<1x16xi32, #tpu.memory_space<vmem>>, vector<1x16xi32>
    %14 = vector.broadcast %13 : vector<1x16xi32> to vector<8x16xi32>
    %15 = arith.cmpi eq, %12, %14 : vector<8x16xi32>
    %16 = arith.extui %15 : vector<8x16xi1> to vector<8x16xi32>
    %17 = arith.sitofp %16 : vector<8x16xi32> to vector<8x16xf32>
    %18 = arith.truncf %17 : vector<8x16xf32> to vector<8x16xbf16>
    %c0_8 = arith.constant 0 : index
    %c0_9 = arith.constant 0 : index
    %19 = vector.load %arg5[%c0_8, %c0_9] : memref<8x256xf32, #tpu.memory_space<vmem>>, vector<8x256xf32>
    %cst_10 = arith.constant dense<0.000000e+00> : vector<8x256xf32>
    %20 = tpu.matmul %18, %11, %cst_10 {dimension_numbers = #tpu.dot_dimension_numbers<[1], [0], [0], [1], [0, 0, 1, 1], [], []>} : vector<8x16xbf16>, vector<16x256xbf16>, vector<8x256xf32> -> vector<8x256xf32>
    %21 = arith.addf %19, %20 : vector<8x256xf32>
    %c0_11 = arith.constant 0 : index
    %c0_12 = arith.constant 0 : index
    %22 = vector.load %arg5[%c0_11, %c0_12] : memref<8x256xf32, #tpu.memory_space<vmem>>, vector<8x256xf32>
    tpu.vector_store %arg5[%c0_11, %c0_12], %21 {strides = array<i32>} : memref<8x256xf32, #tpu.memory_space<vmem>>, vector<8x256xf32>,
    return
  }
  func.func @transform_0(%arg0: i32, %arg1: i32) -> (i32, i32) {
    %c0_i32 = arith.constant 0 : i32
    %c0_i32_0 = arith.constant 0 : i32
    return %c0_i32, %arg0 : i32, i32
  }
  func.func @transform_1(%arg0: i32, %arg1: i32) -> (i32, i32) {
    %c0_i32 = arith.constant 0 : i32
    %c0_i32_0 = arith.constant 0 : i32
    return %arg1, %c0_i32 : i32, i32
  }
  func.func @transform_2(%arg0: i32, %arg1: i32) -> (i32, i32) {
    %c0_i32 = arith.constant 0 : i32
    %c0_i32_0 = arith.constant 0 : i32
    return %c0_i32, %arg1 : i32, i32
  }
  func.func @transform_3(%arg0: i32, %arg1: i32) -> (i32, i32) {
    %c0_i32 = arith.constant 0 : i32
    %c0_i32_0 = arith.constant 0 : i32
    return %c0_i32, %arg0 : i32, i32
  }
}

</mosaic_0001>

<llo_original>
// kernel: tpu_custom_call.1
$region0: #{tpu_custom_call.1}
  #allocation0 [shape = 'u32[]', space=smem, size = 0x4, offset = 0x4, fixed_abs, tag = 'smem constant byte address 0x4 - core index']
  #allocation1 [shape = 'u32[144,128]{1,0:T(1,128)}', space=vmem, size = 0x12000, scoped, tag = 'internal scratch']
  %s0 = inlined_call_operand.vmem [shape: f32[4,512], index: 0, kind: input, shape index: {}]
  %s1 = inlined_call_operand.vmem [shape: f32[16,4], index: 1, kind: input, shape index: {}]
  %s2 = inlined_call_operand.vmem [shape: s32[1,16], index: 2, kind: input, shape index: {}]
  %s3 = inlined_call_operand.hbm [shape: f32[8,512], index: 3, kind: output, shape index: {}]
  %s4 = sld [smem:[#allocation0]]
  $region49: #{tpu_custom_call.1} parent=0
    _
  %s6 = ssub.s32 1, %s4
  %s7 = scalar_select 0, %s6, %s4
  $region1: #{tpu_custom_call.1} parent=0
    #allocation2 [shape = 'u8[16384]{0}', space=vmem, size = 0x4000, scoped, tag = 'output window, operand 0']
    #allocation3 [shape = 's32[2]{0}', space=sflag, size = 0x8, scoped, tag = 'scoped memory for tpu_custom_call.1']
    %8 = vsyncpa [#allocation3], 0
    %s9 = scalar_lea.sflag [#allocation3], 1
    %10 = vsyncpa %s9, 0
    loop: start=0, step=1, limit=4
    $region2: #{tpu_custom_call.1} parent=1 // loop_pre_header
      _
    $region3: #{tpu_custom_call.1} parent=1 // loop_header
      %s12 = sphi 0, %s16
      %p13 = scmp.ge.s32.totalorder %s12, 4
      %s19 = sphi 0, %s31
      %s20 = sphi 0, %s27
      %s21 = sphi 0, %s19
      %s22 = sphi 0, %s20
      %s23 = sphi 0, %s21
      %s24 = sphi 0, %s22
      %s34 = sphi 0, %s36
      %s37 = sphi 0, %s34
      %s38 = sphi 0, %s37
      %s54 = sphi 0, %s38
      %s60 = sphi 0, %s62
      %s63 = sphi 0, %s60
      %s64 = sphi 0, %s63
      %s80 = sphi 0, %s64
      %s86 = sphi 0, %s88
      %s89 = sphi 0, %s86
      %s90 = sphi 0, %s89
      %s106 = sphi 0, %s90
      %s112 = sphi 0, %s114
      %s115 = sphi 0, %s112
      %s116 = sphi 0, %s115
      %s132 = sphi 0, %s116
    $region4: #{tpu_custom_call.1} parent=1 // loop_header_branch
      %15 = sbr.rel (%p13) target = $region8
    $region5: #{tpu_custom_call.1} parent=1 // loop_body
      %s17 = ssub.s32 %s12, 1
      %s18 = ssub.s32 %s12, 2
      %s25 = sadd.s32 1, %s20
      %p26 = scmp.ge.s32.totalorder %s25, 1
      %s27 = scalar_select %p26, 0, %s25
      %s28 = sadd.s32 1, %s19
      %s29 = scalar_select %p26, %s28, %s19
      %p30 = scmp.ge.s32.totalorder %s29, 2
      %s31 = scalar_select %p30, 0, %s29
      %s32 = ssub.s32 %s19, %s31
      %p33 = scmp.eq.s32.totalorder %s32, 0
      %s35 = sadd.s32 %s34, 1
      %s36 = scalar_select %p33, %s34, %s35
      %p39 = pneg %p33
      %p40 = scmp.eq.s32.totalorder %s12, 1
      %p41 = por %p39, %p40
      %p42 = scmp.ne.s32.totalorder %s34, %s37
      %p43 = scmp.eq.s32.totalorder %s12, 0
      %p44 = por %p42, %p43
      %p45 = scmp.ne.s32.totalorder %s34, %s37
      %p46 = scmp.eq.s32.totalorder %s17, 1
      %p47 = por %p45, %p46
      %p48 = scmp.ne.s32.totalorder %s37, %s38
      %p49 = scmp.eq.s32.totalorder %s17, 0
      %p50 = por %p48, %p49
      %p51 = scmp.ne.s32.totalorder %s37, %s38
      %p52 = scmp.eq.s32.totalorder %s18, 1
      %p53 = por %p51, %p52
      %p55 = scmp.ne.s32.totalorder %s38, %s54
      %p56 = scmp.eq.s32.totalorder %s18, 0
      %p57 = por %p55, %p56
      %s58 = ssub.s32 %s20, %s27
      %p59 = scmp.eq.s32.totalorder %s58, 0
      %s61 = sadd.s32 %s60, 1
      %s62 = scalar_select %p59, %s60, %s61
      %p65 = pneg %p59
      %p66 = scmp.eq.s32.totalorder %s12, 1
      %p67 = por %p65, %p66
      %p68 = scmp.ne.s32.totalorder %s60, %s63
      %p69 = scmp.eq.s32.totalorder %s12, 0
      %p70 = por %p68, %p69
      %p71 = scmp.ne.s32.totalorder %s60, %s63
      %p72 = scmp.eq.s32.totalorder %s17, 1
      %p73 = por %p71, %p72
      %p74 = scmp.ne.s32.totalorder %s63, %s64
      %p75 = scmp.eq.s32.totalorder %s17, 0
      %p76 = por %p74, %p75
      %p77 = scmp.ne.s32.totalorder %s63, %s64
      %p78 = scmp.eq.s32.totalorder %s18, 1
      %p79 = por %p77, %p78
      %p81 = scmp.ne.s32.totalorder %s64, %s80
      %p82 = scmp.eq.s32.totalorder %s18, 0
      %p83 = por %p81, %p82
      %s84 = ssub.s32 %s20, %s27
      %p85 = scmp.eq.s32.totalorder %s84, 0
      %s87 = sadd.s32 %s86, 1
      %s88 = scalar_select %p85, %s86, %s87
      %p91 = pneg %p85
      %p92 = scmp.eq.s32.totalorder %s12, 1
      %p93 = por %p91, %p92
      %p94 = scmp.ne.s32.totalorder %s86, %s89
      %p95 = scmp.eq.s32.totalorder %s12, 0
      %p96 = por %p94, %p95
      %p97 = scmp.ne.s32.totalorder %s86, %s89
      %p98 = scmp.eq.s32.totalorder %s17, 1
      %p99 = por %p97, %p98
      %p100 = scmp.ne.s32.totalorder %s89, %s90
      %p101 = scmp.eq.s32.totalorder %s17, 0
      %p102 = por %p100, %p101
      %p103 = scmp.ne.s32.totalorder %s89, %s90
      %p104 = scmp.eq.s32.totalorder %s18, 1
      %p105 = por %p103, %p104
      %p107 = scmp.ne.s32.totalorder %s90, %s106
      %p108 = scmp.eq.s32.totalorder %s18, 0
      %p109 = por %p107, %p108
      %s110 = ssub.s32 %s19, %s31
      %p111 = scmp.eq.s32.totalorder %s110, 0
      %s113 = sadd.s32 %s112, 1
      %s114 = scalar_select %p111, %s112, %s113
      %p117 = pneg %p111
      %p118 = scmp.eq.s32.totalorder %s12, 1
      %p119 = por %p117, %p118
      %p120 = scmp.ne.s32.totalorder %s112, %s115
      %p121 = scmp.eq.s32.totalorder %s12, 0
      %p122 = por %p120, %p121
      %p123 = scmp.ne.s32.totalorder %s112, %s115
      %p124 = scmp.eq.s32.totalorder %s17, 1
      %p125 = por %p123, %p124
      %p126 = scmp.ne.s32.totalorder %s115, %s116
      %p127 = scmp.eq.s32.totalorder %s17, 0
      %p128 = por %p126, %p127
      %p129 = scmp.ne.s32.totalorder %s115, %s116
      %p130 = scmp.eq.s32.totalorder %s18, 1
      %p131 = por %p129, %p130
      %p133 = scmp.ne.s32.totalorder %s116, %s132
      %p134 = scmp.eq.s32.totalorder %s18, 0
      %p135 = por %p133, %p134
      %p136 = scmp.le.s32.totalorder 1, %s12
      %p137 = scmp.lt.s32.totalorder %s12, 3
      %p138 = pnand %p136, %p137
      %p139 = pneg %p138
      // Predicated region
      $region9: #{tpu_custom_call.1} parent=5 // pred_check
        _
      $region10: #{tpu_custom_call.1} parent=5 // pred_check_branch
        %141 = sbr.rel (%p138) target = $region12
      $region11: #{tpu_custom_call.1} parent=5 // pred_region
        %s142 = ssub.s32 %s12, 1
        // Predicated region
        $region13: #{tpu_custom_call.1} parent=11 // pred_check
          %p143 = pneg %p76
        $region14: #{tpu_custom_call.1} parent=11 // pred_check_branch
          %145 = sbr.rel (%p143) target = $region16
        $region15: #{tpu_custom_call.1} parent=11 // pred_region
          %s146 = smul.u32 2, %s22
          %p147 = scmp.lt.s32.totalorder %s146, 1
          %s148 = scalar_select %p147, %s146, 1
          %s149 = smul.addr %s148, 8
          %s150 = scalar_lea.vmem %s1, %s149
          %s151 = smul.u32 2, %s22
        $region16: #{tpu_custom_call.1} parent=11 // pred_fallthru
          _
        // Predicated region
        $region17: #{tpu_custom_call.1} parent=11 // pred_check
          %p152 = pneg %p102
        $region18: #{tpu_custom_call.1} parent=11 // pred_check_branch
          %154 = sbr.rel (%p152) target = $region20
        $region19: #{tpu_custom_call.1} parent=11 // pred_region
          %p155 = scmp.lt.s32.totalorder %s22, 0
          %s156 = scalar_select %p155, %s22, 0
          %s157 = scalar_lea.vmem %s2, %s156
        $region20: #{tpu_custom_call.1} parent=11 // pred_fallthru
          _
      $region12: #{tpu_custom_call.1} parent=5 // pred_fallthru
        _
      %p158 = scmp.lt.s32.totalorder %s12, 2
      // Predicated region
      $region21: #{tpu_custom_call.1} parent=5 // pred_check
        %p159 = pneg %p158
      $region22: #{tpu_custom_call.1} parent=5 // pred_check_branch
        %161 = sbr.rel (%p159) target = $region24
      $region23: #{tpu_custom_call.1} parent=5 // pred_region
        // Predicated region
        $region25: #{tpu_custom_call.1} parent=23 // pred_check
          %p162 = pneg %p44
        $region26: #{tpu_custom_call.1} parent=23 // pred_check_branch
          %164 = sbr.rel (%p162) target = $region28
        $region27: #{tpu_custom_call.1} parent=23 // pred_region
          %s165 = smul.u32 2, %s19
          %p166 = scmp.lt.s32.totalorder %s165, 3
          %s167 = scalar_select %p166, %s165, 3
          %s168 = smul.addr %s167, 4
          %s169 = scalar_lea.vmem %s0, %s168
          %s170 = smul.u32 2, %s19
        $region28: #{tpu_custom_call.1} parent=23 // pred_fallthru
          _
      $region24: #{tpu_custom_call.1} parent=5 // pred_fallthru
        _
      %p171 = scmp.le.s32.totalorder 1, %s12
      %p172 = scmp.lt.s32.totalorder %s12, 3
      %p173 = pnand %p171, %p172
      %p174 = pneg %p173
      // Predicated region
      $region29: #{tpu_custom_call.1} parent=5 // pred_check
        _
      $region30: #{tpu_custom_call.1} parent=5 // pred_check_branch
        %176 = sbr.rel (%p173) target = $region32
      $region31: #{tpu_custom_call.1} parent=5 // pred_region
        %s177 = ssub.s32 %s12, 1
        %s178 = smul.u32 2, %s21
        %p179 = scmp.lt.s32.totalorder %s178, 3
        %s180 = scalar_select %p179, %s178, 3
        %s181 = smul.addr %s180, 4
        %s182 = scalar_lea.vmem %s0, %s181
        %p183 = pneg %p50
        %p184 = pneg %p47
        %s185 = smul.u32 2, %s22
        %p186 = scmp.lt.s32.totalorder %s185, 1
        %s187 = scalar_select %p186, %s185, 1
        %s188 = smul.addr %s187, 8
        %s189 = scalar_lea.vmem %s1, %s188
        %p190 = pneg %p76
        %p191 = pneg %p73
        %p192 = scmp.lt.s32.totalorder %s22, 0
        %s193 = scalar_select %p192, %s22, 0
        %s194 = scalar_lea.vmem %s2, %s193
        %p195 = pneg %p102
        %p196 = pneg %p99
        %p197 = pneg %p128
        %p198 = pneg %p125
        %s199 = sand.u32 %s115, 1
        %s200 = scalar_lea.sflag [#allocation3], %s199
        %s201 = sand.u32 %s115, 1
        %s202 = smul.addr %s201, 16
        %s203 = scalar_lea.vmem [#allocation2], %s202
        %s204 = smul.u32 2, %s21
        %p205 = scmp.lt.s32.totalorder %s204, 3
        %s206 = scalar_select %p205, %s204, 3
        %s207 = smul.addr %s206, 4
        %s208 = scalar_lea.vmem %s0, %s207
        %s209 = smul.u32 2, %s21
        %s210 = smul.u32 2, %s22
        %p211 = scmp.lt.s32.totalorder %s210, 1
        %s212 = scalar_select %p211, %s210, 1
        %s213 = smul.addr %s212, 8
        %s214 = scalar_lea.vmem %s1, %s213
        %s215 = smul.u32 2, %s22
        %p216 = scmp.lt.s32.totalorder %s22, 0
        %s217 = scalar_select %p216, %s22, 0
        %s218 = scalar_lea.vmem %s2, %s217
        %s219 = smul.u32 2, %s21
        %p221 = scmp.eq.s32.totalorder %s22, 0
        // Predicated region
        $region33: #{tpu_custom_call.1} parent=31 // pred_check
          %p222 = pneg %p221
        $region34: #{tpu_custom_call.1} parent=31 // pred_check_branch
          %224 = sbr.rel (%p222) target = $region36
        $region35: #{tpu_custom_call.1} parent=31 // pred_region
          %225 = vst [vmem:[%s203] sm:$0xff] 0.0
          %226 = vst [vmem:[%s203 + $0x8] sm:$0xff] 0.0
        $region36: #{tpu_custom_call.1} parent=31 // pred_fallthru
          _
        %v227 = vld [vmem:[%s214] sm:$0xff]
        %v228 = vld [vmem:[%s214 + $0x8] sm:$0xff]
        %v229 = vld [vmem:[%s208] sm:$0xff]
        %v231 = vcombine.high %v229, %v229
        %vm232 = vcmask 31744
        %v234 = vsel %vm232, %v227, 0
        %v237 = vsel %vm232, %v228, 0
        %vm239 = vcmask 1043456
        %v240 = vsel %vm239, %v229, 0
        %v242 = vsel %vm239, %v231, 0
        %244 = vmatprep.subr.mxu0 0.0
        %245 = vmatpush1.msra.mxu0 0.0
        %246 = vmatprep.subr.mxu0 0.0
        %247 = vmatpush1.msra.mxu0 0.0
        %248 = vmatprep.subr.mxu0 0.0
        %249 = vmatpush1.msra.mxu0 0.0
        %250 = vmatprep.subr.mxu0 0.0
        %251 = vmatpush1.msra.mxu0 0.0
        %252 = vmatprep.subr.mxu0 0.0
        %253 = vmatpush1.msra.mxu0 0.0
        %254 = vmatprep.subr.mxu0 0.0
        %255 = vmatpush1.msra.mxu0 0.0
        %256 = vmatprep.subr.mxu0 0.0
        %257 = vmatpush1.msra.mxu0 0.0
        %258 = vmatprep.subr.mxu0 0.0
        %259 = vmatpush1.msra.mxu0 0.0
        %260 = vmatprep.subr.mxu0 0.0
        %261 = vmatpush1.msra.mxu0 0.0
        %262 = vmatprep.subr.mxu0 0.0
        %263 = vmatpush1.msra.mxu0 0.0
        %264 = vmatprep.subr.mxu0 0.0
        %265 = vmatpush1.msra.mxu0 0.0
        %266 = vmatprep.subr.mxu0 0.0
        %267 = vmatpush1.msra.mxu0 0.0
        %268 = vmatprep.subr.mxu0 0.0
        %269 = vmatpush1.msra.mxu0 0.0
        %270 = vmatprep.subr.mxu0 0.0
        %271 = vmatpush1.msra.mxu0 0.0
        %272 = vmatprep.subr.mxu0 0.0
        %273 = vmatpush1.msra.mxu0 0.0
        %274 = vmatprep.subr.mxu0 %v242
        %275 = vmatpush1.msra.mxu0 %v240
        %276 = vmatprep.subr.mxu0 0.0
        %277 = vmatpush2.msra.mxu0 0.0
        %278 = vmatprep.subr.mxu0 0.0
        %279 = vmatpush2.msra.mxu0 0.0
        %280 = vmatprep.subr.mxu0 0.0
        %281 = vmatpush2.msra.mxu0 0.0
        %282 = vmatprep.subr.mxu0 0.0
        %283 = vmatpush2.msra.mxu0 0.0
        %284 = vmatprep.subr.mxu0 0.0
        %285 = vmatpush2.msra.mxu0 0.0
        %286 = vmatprep.subr.mxu0 0.0
        %287 = vmatpush2.msra.mxu0 0.0
        %288 = vmatprep.subr.mxu0 0.0
        %289 = vmatpush2.msra.mxu0 0.0
        %290 = vmatprep.subr.mxu0 0.0
        %291 = vmatpush2.msra.mxu0 0.0
        %292 = vmatprep.subr.mxu0 0.0
        %293 = vmatpush2.msra.mxu0 0.0
        %294 = vmatprep.subr.mxu0 0.0
        %295 = vmatpush2.msra.mxu0 0.0
        %296 = vmatprep.subr.mxu0 0.0
        %297 = vmatpush2.msra.mxu0 0.0
        %298 = vmatprep.subr.mxu0 0.0
        %299 = vmatpush2.msra.mxu0 0.0
        %300 = vmatprep.subr.mxu0 0.0
        %301 = vmatpush2.msra.mxu0 0.0
        %302 = vmatprep.subr.mxu0 0.0
        %303 = vmatpush2.msra.mxu0 0.0
        %304 = vmatprep.subr.mxu0 0.0
        %305 = vmatpush2.msra.mxu0 0.0
        %306 = vmatprep.subr.mxu0 0.0
        %307 = vmatpush2.msra.mxu0 0.0
        %308 = vmatprep.mubr.f32.mxu0 0.0
        %309 = vmatmul.mubr.f32.gmra.mxu0 %v234
        %v310 = vpop.f32.mrf.mxu0
        %v311 = vadd.f32 0.0, %v310
        %v312 = vpop.f32.mrf.mxu0
        %v313 = vadd.f32 0.0, %v312
        %314 = vmatprep.mubr.f32.mxu0 0.0
        %315 = vmatmul.mubr.f32.gmra.mxu0 %v237
        %v316 = vpop.f32.mrf.mxu0
        %v317 = vadd.f32 0.0, %v316
        %v318 = vpop.f32.mrf.mxu0
        %v319 = vadd.f32 0.0, %v318
        %320 = vdwg.mxu0
        %v321 = vtanh.pop %v311
        %v322 = vtanh.pop %v313
        %v323 = vtanh.pop %v317
        %v324 = vtanh.pop %v319
        %v325 = vmul.f32 %v321, 0.5
        %v326 = vmul.f32 %v322, 0.5
        %v327 = vmul.f32 %v323, 0.5
        %v328 = vmul.f32 %v324, 0.5
        %v329 = vadd.f32 %v325, 0.5
        %v330 = vadd.f32 %v326, 0.5
        %v331 = vadd.f32 %v327, 0.5
        %v332 = vadd.f32 %v328, 0.5
        %v333 = vpack.c.bf16 %v331, %v329
        %v334 = vpack.c.bf16 %v332, %v330
        %v335 = vlaneseq
        %v336 = vshrl.u32 %v335, 7
        %v337 = vld [vmem:[%s218] sm:$0x1]
        %v338 = vlaneseq
        %v339 = vshrl.u32 %v338, 7
        %v340 = vsub.s32 0, %v339
        %v341 = vrot.slane %v337, %v340
        %vm342 = vcmp.eq.s32.totalorder %v336, %v341
        %v343 = vsel %vm342, 1, 0
        %v344 = vcvt.s32.f32 %v343
        %v345 = vpack.c.bf16 %v344, %v344
        %v346 = vld [vmem:[%s203] sm:$0xff]
        %v347 = vld [vmem:[%s203 + $0x8] sm:$0xff]
        %vm348 = vcmask 130048
        %v350 = vsel %vm348, %v345, 0
        %352 = vmatprep.subr.bf16.mxu0 0
        %353 = vmatpush1.bf16.msra.mxu0 0
        %354 = vmatprep.subr.bf16.mxu0 0
        %355 = vmatpush1.bf16.msra.mxu0 0
        %356 = vmatprep.subr.bf16.mxu0 0
        %357 = vmatpush1.bf16.msra.mxu0 0
        %358 = vmatprep.subr.bf16.mxu0 0
        %359 = vmatpush1.bf16.msra.mxu0 0
        %360 = vmatprep.subr.bf16.mxu0 0
        %361 = vmatpush1.bf16.msra.mxu0 0
        %362 = vmatprep.subr.bf16.mxu0 0
        %363 = vmatpush1.bf16.msra.mxu0 0
        %364 = vmatprep.subr.bf16.mxu0 0
        %365 = vmatpush1.bf16.msra.mxu0 0
        %366 = vmatprep.subr.bf16.mxu0 %v334
        %367 = vmatpush1.bf16.msra.mxu0 %v333
        %368 = vmatprep.subr.bf16.mxu0 0
        %369 = vmatpush2.bf16.msra.mxu0 0
        %370 = vmatprep.subr.bf16.mxu0 0
        %371 = vmatpush2.bf16.msra.mxu0 0
        %372 = vmatprep.subr.bf16.mxu0 0
        %373 = vmatpush2.bf16.msra.mxu0 0
        %374 = vmatprep.subr.bf16.mxu0 0
        %375 = vmatpush2.bf16.msra.mxu0 0
        %376 = vmatprep.subr.bf16.mxu0 0
        %377 = vmatpush2.bf16.msra.mxu0 0
        %378 = vmatprep.subr.bf16.mxu0 0
        %379 = vmatpush2.bf16.msra.mxu0 0
        %380 = vmatprep.subr.bf16.mxu0 0
        %381 = vmatpush2.bf16.msra.mxu0 0
        %382 = vmatprep.subr.bf16.mxu0 0
        %383 = vmatpush2.bf16.msra.mxu0 0
        %384 = vmatprep.mubr.bf16.mxu0 0
        %385 = vmatmul.mubr.bf16.gmra.mxu0 %v350
        %v386 = vpop.f32.mrf.mxu0
        %v387 = vadd.f32 0.0, %v386
        %v388 = vpop.f32.mrf.mxu0
        %v389 = vadd.f32 0.0, %v388
        %v390 = vpop.f32.mrf.mxu0
        %v391 = vpop.f32.mrf.mxu0
        %392 = vdwg.mxu0
        %v393 = vadd.f32 %v346, %v387
        %v394 = vadd.f32 %v347, %v389
        %395 = vst [vmem:[%s203] sm:$0xff] %v393
        %396 = vst [vmem:[%s203 + $0x8] sm:$0xff] %v394
        %s397 = sand.u32 %s115, 1
        %s398 = scalar_lea.sflag [#allocation3], %s397
        %s399 = sand.u32 %s115, 1
        %s400 = smul.addr %s399, 16
        %s401 = scalar_lea.vmem [#allocation2], %s400
        // Predicated region
        $region37: #{tpu_custom_call.1} parent=31 // pred_check
          %p402 = pneg %p125
        $region38: #{tpu_custom_call.1} parent=31 // pred_check_branch
          %404 = sbr.rel (%p402) target = $region40
        $region39: #{tpu_custom_call.1} parent=31 // pred_region
          %s405 = smul.u32 2, %s21
          %s407 = ssub.s32 256, 256
          %408 = vsyncadd %s398, %s407
          %s409 = smul.addr %s405, 128
          %s410 = scalar_lea.hbm %s3, %s409
          %s412 = sshll.u32 %s401, 4
          %s413 = int_to_ptr.vmem [resolvable:$true] %s412
          %415 = dma.vmem_to_hbm [thread:$0]  %s413, 256, %s410, %s398
        $region40: #{tpu_custom_call.1} parent=31 // pred_fallthru
          _
      $region32: #{tpu_custom_call.1} parent=5 // pred_fallthru
        _
      %p416 = scmp.le.s32.totalorder 2, %s12
      // Predicated region
      $region41: #{tpu_custom_call.1} parent=5 // pred_check
        %p417 = pneg %p416
      $region42: #{tpu_custom_call.1} parent=5 // pred_check_branch
        %419 = sbr.rel (%p417) target = $region44
      $region43: #{tpu_custom_call.1} parent=5 // pred_region
        %s420 = ssub.s32 %s12, 2
        // Predicated region
        $region45: #{tpu_custom_call.1} parent=43 // pred_check
          %p421 = pneg %p131
        $region46: #{tpu_custom_call.1} parent=43 // pred_check_branch
          %423 = sbr.rel (%p421) target = $region48
        $region47: #{tpu_custom_call.1} parent=43 // pred_region
          %s424 = sand.u32 %s116, 1
          %s425 = scalar_lea.sflag [#allocation3], %s424
          %s426 = sand.u32 %s116, 1
          %s427 = smul.addr %s426, 16
          %s428 = scalar_lea.vmem [#allocation2], %s427
          %429 = dma.done %s425, 256
        $region48: #{tpu_custom_call.1} parent=43 // pred_fallthru
          _
      $region44: #{tpu_custom_call.1} parent=5 // pred_fallthru
        _
    $region6: #{tpu_custom_call.1} parent=1 // loop_footer
      %s16 = sadd.s32 1, %s12
    $region7: #{tpu_custom_call.1} parent=1 // loop_footer_branch
      %11 = sbr.rel target = $region3
    $region8: #{tpu_custom_call.1} parent=1 // loop_exit
      _
    %430 = vsyncpa [#allocation3], 1
    %s431 = scalar_lea.sflag [#allocation3], 1
    %432 = vsyncpa %s431, 1

</llo_original>
